<compile_context>
chip_gen: v7x
topology: tpu7x:2x2x1
jax: 0.10.0
libtpu: 0.0.40
codegen_flags: <defaults>
</compile_context>

<pallas_src>
import jax
import jax.numpy as jnp
from jax.experimental import pallas as pl
from jax.experimental.pallas import tpu as pltpu

NUM_SLOTS = 4  # feat1..feat4


def _round_up(x, m):
    return ((x + m - 1) // m) * m


def _attention_combinator_kernel(feats_ref, alpha_blk_ref, expand_ref, w_ref,
                                 out_ref):
    """One grid step processes one tile of TM nodes.

    feats_ref     : (TM, 4D) VMEM  node-major, lane-dense flat feats (bf16/f32)
    alpha_blk_ref : (4D, 4)  VMEM  block-diagonal alpha (f32)
    expand_ref    : (4, 4D)  VMEM  0/1 slot->lane expander (f32)
    w_ref         : (4D, E)  VMEM  weight pre-transposed (bf16/f32)
    out_ref       : (TM, E)  VMEM
    """
    feats_f32 = feats_ref[...].astype(jnp.float32)                  # (TM, 4D)
    # Per-slot attention scores via block-diagonal alpha: (TM,4D)@(4D,4).
    scores = jnp.dot(feats_f32, alpha_blk_ref[...],
                     preferred_element_type=jnp.float32)            # (TM, 4)
    att_w = jnp.exp(jnp.maximum(scores, 0.0))                       # exp(relu)
    # Broadcast each slot's weight across its D lanes via MXU: (TM,4)@(4,4D).
    att_b = jnp.dot(att_w, expand_ref[...],
                    preferred_element_type=jnp.float32)             # (TM, 4D)
    scaled = (feats_f32 * att_b).astype(w_ref.dtype)                # bf16 MXU path
    acc = jnp.dot(scaled, w_ref[...],
                  preferred_element_type=jnp.float32)               # (TM, E)
    out_ref[...] = jnp.maximum(acc, 0.0).astype(out_ref.dtype)


def prepare_attention_combinator_params(alpha, weight, *,
                                        compute_dtype=jnp.bfloat16):
    """Hoistable / cacheable operand prep (call once per parameter update)."""
    d = alpha.shape[0]
    kd = NUM_SLOTS * d
    assert weight.shape[1] == kd, (weight.shape, kd)
    eye = jnp.eye(NUM_SLOTS, dtype=jnp.float32)
    # Block-diagonal alpha (4D, 4): alpha_blk[s*D + j, s] = alpha[j].
    alpha_blk = (eye[:, None, :] * alpha.astype(jnp.float32).reshape(1, d, 1)
                 ).reshape(kd, NUM_SLOTS)
    # Expander (4, 4D): row s is 1 over lanes s*D:(s+1)*D.
    expand = jnp.repeat(eye, d, axis=1)
    # Projection, pre-transposed once: (4D, E), narrow dtype for HBM + MXU.
    w_full = weight.T.astype(compute_dtype)
    return alpha_blk, expand, w_full


def attention_combinator_apply(feats, params, *, tile_m=1024,
                               out_dtype=jnp.float32):
    """feats: [N, 4, D]; params from prepare_attention_combinator_params()."""
    alpha_blk, expand, w_full = params
    n, s, d = feats.shape
    assert s == NUM_SLOTS
    kd = NUM_SLOTS * d
    e = w_full.shape[1]
    compute_dtype = w_full.dtype

    # Node-major flat feats: contiguous reshape (no HBM re-layout); narrow
    # dtype halves the dominant HBM read. No jnp.pad copy -- the ragged last
    # block is handled by Pallas (OOB rows are discarded at writeback).
    feats_flat = feats.reshape(n, kd).astype(compute_dtype)

    # Balanced tiles; >=2 grid steps whenever possible so v7x's two
    # TensorCores both get work via dimension_semantics=("parallel",).
    num_tiles = pl.cdiv(n, tile_m)
    if n >= 16:
        num_tiles = max(num_tiles, 2)
    tm = _round_up(pl.cdiv(n, num_tiles), 8)
    grid = (pl.cdiv(n, tm),)
    n_work = grid[0] * tm

    in_bytes = jnp.dtype(compute_dtype).itemsize
    out_bytes = jnp.dtype(out_dtype).itemsize
    flops = (2 * n_work * kd * e              # fused K=4D projection
             + 2 * n_work * kd * NUM_SLOTS    # score matmul
             + 2 * n_work * NUM_SLOTS * kd    # slot->lane broadcast matmul
             + 2 * n_work * kd)               # scale + relu
    bytes_accessed = (n * kd * in_bytes + n * e * out_bytes
                      + kd * e * in_bytes + 2 * kd * NUM_SLOTS * 4)

    # Double-buffered VMEM footprint estimate; only override the scoped limit
    # when it would exceed the smallest (v5e, 16 MiB) default.
    vmem_est = (2 * (tm * kd * in_bytes + tm * e * out_bytes + kd * e * in_bytes)
                + 4 * kd * NUM_SLOTS * 4)
    vmem_limit = None
    if vmem_est > 16 * 1024 * 1024:
        vmem_limit = min(int(vmem_est * 3 // 2), 96 * 1024 * 1024)

    return pl.pallas_call(
        _attention_combinator_kernel,
        out_shape=jax.ShapeDtypeStruct((n, e), out_dtype),
        grid_spec=pltpu.PrefetchScalarGridSpec(
            num_scalar_prefetch=0,
            grid=grid,
            in_specs=[
                pl.BlockSpec((tm, kd), lambda i: (i, 0)),
                pl.BlockSpec((kd, NUM_SLOTS), lambda i: (0, 0)),
                pl.BlockSpec((NUM_SLOTS, kd), lambda i: (0, 0)),
                pl.BlockSpec((kd, e), lambda i: (0, 0)),
            ],
            out_specs=pl.BlockSpec((tm, e), lambda i: (i, 0)),
        ),
        compiler_params=pltpu.CompilerParams(
            dimension_semantics=("parallel",),
            vmem_limit_bytes=vmem_limit),
        cost_estimate=pl.CostEstimate(
            flops=flops,
            transcendentals=n_work * NUM_SLOTS,
            bytes_accessed=bytes_accessed),
    )(feats_flat, alpha_blk, expand, w_full)


def attention_combinator_forward(feats, alpha, weight, *, tile_m=1024,
                                 compute_dtype=jnp.bfloat16,
                                 out_dtype=jnp.float32):
    params = prepare_attention_combinator_params(
        alpha, weight, compute_dtype=compute_dtype)
    return attention_combinator_apply(feats, params, tile_m=tile_m,
                                      out_dtype=out_dtype)


def _xavier_uniform(key, shape):
    fan_out, fan_in = shape
    bound = jnp.sqrt(6.0 / (fan_in + fan_out))
    return jax.random.uniform(key, shape, jnp.float32, -bound, bound)


def _reference_forward(feats, alpha, weight):
    """Pure-JAX f32 reference mirroring the PyTorch code path."""
    n = feats.shape[0]
    att_weight = jnp.exp(jax.nn.relu(jnp.squeeze(feats @ alpha, axis=-1)))  # [N,4]
    att_weight_sum = jnp.sum(att_weight, axis=1, keepdims=True)             # unused,
    _ = att_weight / att_weight_sum                                         # as in torch
    combined = (feats * att_weight[:, :, None]).reshape(n, -1)              # [N,4D]
    embed = jax.nn.relu(weight @ combined.T)                                # [E, N]
    return embed.T                                                          # [N, E]


if __name__ == "__main__":
    feat_dim = 32
    embed_dim = 32
    num_total_nodes = 40
    n_nodes = 20  # not a multiple of the tile -> exercises the ragged last block

    key = jax.random.PRNGKey(0)
    k_w, k_a, k_t1, k_t2, k_t3, k_t4, k_idx = jax.random.split(key, 7)

    # Parameters (deterministic, xavier-uniform-style).
    weight = _xavier_uniform(k_w, (embed_dim, feat_dim * NUM_SLOTS))
    alpha = _xavier_uniform(k_a, (feat_dim, 1))

    # feat1..feat4 modeled as embedding tables; lookup stays plain-JAX glue.
    tables = [
        jax.random.normal(k, (num_total_nodes, feat_dim), jnp.float32)
        for k in (k_t1, k_t2, k_t3, k_t4)
    ]
    nodes = jax.random.randint(k_idx, (n_nodes,), 0, num_total_nodes)
    feats = jnp.stack([t[nodes] for t in tables], axis=1)  # [N, 4, D] f32

    # Prepared (cacheable) params + jitted apply: default bf16 operand streams.
    params = prepare_attention_combinator_params(alpha, weight)
    apply_fn = jax.jit(attention_combinator_apply)
    out = jax.block_until_ready(apply_fn(feats, params))

    ref = _reference_forward(feats, alpha, weight)
    scale = float(jnp.max(jnp.abs(ref))) + 1e-6
    assert out.shape == (n_nodes, embed_dim)

    # bf16-stream path: loosened, scale-aware tolerance.
    err_bf16 = float(jnp.max(jnp.abs(out.astype(jnp.float32) - ref)))
    assert err_bf16 <= 5e-2 * scale + 1e-3, (err_bf16, scale)

    # f32-stream path: tighter check of the exact kernel structure.
    out_f32 = jax.block_until_ready(
        attention_combinator_forward(feats, alpha, weight,
                                     compute_dtype=jnp.float32))
    err_f32 = float(jnp.max(jnp.abs(out_f32 - ref)))
    assert err_f32 <= 1e-2 * scale + 1e-4, (err_f32, scale)

    print("KERNEL_OK")
</pallas_src>

<mosaic_0001>
module attributes {stable_mosaic.version = 11 : i64} {
  func.func @_attention_combinator_kernel(%arg0: i32, %arg1: memref<16x128xbf16, #tpu.memory_space<vmem>>, %arg2: memref<128x4xf32, #tpu.memory_space<vmem>>, %arg3: memref<4x128xf32, #tpu.memory_space<vmem>>, %arg4: memref<128x32xbf16, #tpu.memory_space<vmem>>, %arg5: memref<16x32xf32, #tpu.memory_space<vmem>>) attributes {dimension_semantics = [#tpu.dimension_semantics<parallel>], iteration_bounds = array<i64: 2>, scalar_prefetch = 0 : i64, scratch_operands = 0 : i64, tpu.core_type = #tpu.core_type<tc>, window_params = [{transform_indices = @transform_0, window_bounds = array<i64: 16, 128>}, {pipeline_mode = #tpu.pipeline_mode<synchronous>, transform_indices = @transform_1, window_bounds = array<i64: 128, 4>}, {pipeline_mode = #tpu.pipeline_mode<synchronous>, transform_indices = @transform_2, window_bounds = array<i64: 4, 128>}, {pipeline_mode = #tpu.pipeline_mode<synchronous>, transform_indices = @transform_3, window_bounds = array<i64: 128, 32>}, {transform_indices = @transform_4, window_bounds = array<i64: 16, 32>}]} {
    %c0 = arith.constant 0 : index
    %c0_0 = arith.constant 0 : index
    %0 = vector.load %arg1[%c0, %c0_0] : memref<16x128xbf16, #tpu.memory_space<vmem>>, vector<16x128xbf16>
    %1 = arith.extf %0 : vector<16x128xbf16> to vector<16x128xf32>
    %c0_1 = arith.constant 0 : index
    %c0_2 = arith.constant 0 : index
    %2 = vector.load %arg2[%c0_1, %c0_2] : memref<128x4xf32, #tpu.memory_space<vmem>>, vector<128x4xf32>
    %cst = arith.constant dense<0.000000e+00> : vector<16x4xf32>
    %3 = tpu.matmul %1, %2, %cst {dimension_numbers = #tpu.dot_dimension_numbers<[1], [0], [0], [1], [0, 0, 1, 1], [], []>} : vector<16x128xf32>, vector<128x4xf32>, vector<16x4xf32> -> vector<16x4xf32>
    %cst_3 = arith.constant 0.000000e+00 : f32
    %4 = vector.broadcast %cst_3 : f32 to vector<16x4xf32>
    %5 = arith.maximumf %3, %4 : vector<16x4xf32>
    %6 = math.exp %5 : vector<16x4xf32>
    %c0_4 = arith.constant 0 : index
    %c0_5 = arith.constant 0 : index
    %7 = vector.load %arg3[%c0_4, %c0_5] : memref<4x128xf32, #tpu.memory_space<vmem>>, vector<4x128xf32>
    %cst_6 = arith.constant dense<0.000000e+00> : vector<16x128xf32>
    %8 = tpu.matmul %6, %7, %cst_6 {dimension_numbers = #tpu.dot_dimension_numbers<[1], [0], [0], [1], [0, 0, 1, 1], [], []>} : vector<16x4xf32>, vector<4x128xf32>, vector<16x128xf32> -> vector<16x128xf32>
    %9 = arith.mulf %1, %8 : vector<16x128xf32>
    %10 = arith.truncf %9 : vector<16x128xf32> to vector<16x128xbf16>
    %c0_7 = arith.constant 0 : index
    %c0_8 = arith.constant 0 : index
    %11 = vector.load %arg4[%c0_7, %c0_8] : memref<128x32xbf16, #tpu.memory_space<vmem>>, vector<128x32xbf16>
    %cst_9 = arith.constant dense<0.000000e+00> : vector<16x32xf32>
    %12 = tpu.matmul %10, %11, %cst_9 {dimension_numbers = #tpu.dot_dimension_numbers<[1], [0], [0], [1], [0, 0, 1, 1], [], []>} : vector<16x128xbf16>, vector<128x32xbf16>, vector<16x32xf32> -> vector<16x32xf32>
    %cst_10 = arith.constant 0.000000e+00 : f32
    %13 = vector.broadcast %cst_10 : f32 to vector<16x32xf32>
    %14 = arith.maximumf %12, %13 : vector<16x32xf32>
    %c0_11 = arith.constant 0 : index
    %c0_12 = arith.constant 0 : index
    %15 = vector.load %arg5[%c0_11, %c0_12] : memref<16x32xf32, #tpu.memory_space<vmem>>, vector<16x32xf32>
    tpu.vector_store %arg5[%c0_11, %c0_12], %14 {strides = array<i32>} : memref<16x32xf32, #tpu.memory_space<vmem>>, vector<16x32xf32>,
    return
  }
  func.func @transform_0(%arg0: i32) -> (i32, i32) {
    %c0_i32 = arith.constant 0 : i32
    %c0_i32_0 = arith.constant 0 : i32
    return %arg0, %c0_i32 : i32, i32
  }
  func.func @transform_1(%arg0: i32) -> (i32, i32) {
    %c0_i32 = arith.constant 0 : i32
    %c0_i32_0 = arith.constant 0 : i32
    %c0_i32_1 = arith.constant 0 : i32
    return %c0_i32, %c0_i32_0 : i32, i32
  }
  func.func @transform_2(%arg0: i32) -> (i32, i32) {
    %c0_i32 = arith.constant 0 : i32
    %c0_i32_0 = arith.constant 0 : i32
    %c0_i32_1 = arith.constant 0 : i32
    return %c0_i32, %c0_i32_0 : i32, i32
  }
  func.func @transform_3(%arg0: i32) -> (i32, i32) {
    %c0_i32 = arith.constant 0 : i32
    %c0_i32_0 = arith.constant 0 : i32
    %c0_i32_1 = arith.constant 0 : i32
    return %c0_i32, %c0_i32_0 : i32, i32
  }
  func.func @transform_4(%arg0: i32) -> (i32, i32) {
    %c0_i32 = arith.constant 0 : i32
    %c0_i32_0 = arith.constant 0 : i32
    return %arg0, %c0_i32 : i32, i32
  }
}

</mosaic_0001>

<llo_original>
// kernel: attention_combinator_apply.1
$region0: #{attention_combinator_apply.1}
  #allocation0 [shape = 'u32[]', space=smem, size = 0x4, offset = 0x4, fixed_abs, tag = 'smem constant byte address 0x4 - core index']
  #allocation1 [shape = 'u32[144,128]{1,0:T(1,128)}', space=vmem, size = 0x12000, scoped, tag = 'internal scratch']
  %s0 = inlined_call_operand.vmem [shape: bf16[20,128], index: 0, kind: input, shape index: {}]
  %s1 = inlined_call_operand.vmem [shape: f32[128,4], index: 1, kind: input, shape index: {}]
  %s2 = inlined_call_operand.vmem [shape: f32[4,128], index: 2, kind: input, shape index: {}]
  %s3 = inlined_call_operand.vmem [shape: bf16[128,32], index: 3, kind: input, shape index: {}]
  %s4 = inlined_call_operand.hbm [shape: f32[20,32], index: 4, kind: output, shape index: {}]
  %s5 = sld [smem:[#allocation0]]
  $region49: #{attention_combinator_apply.1} parent=0
    _
  %s7 = ssub.s32 1, %s5
  %s8 = scalar_select 0, %s7, %s5
  $region1: #{attention_combinator_apply.1} parent=0
    #allocation2 [shape = 'u8[16384]{0}', space=vmem, size = 0x4000, scoped, tag = 'output window, operand 0']
    #allocation3 [shape = 's32[2]{0}', space=sflag, size = 0x8, scoped, tag = 'scoped memory for attention_combinator_apply.1']
    %9 = vsyncpa [#allocation3], 0
    %s10 = scalar_lea.sflag [#allocation3], 1
    %11 = vsyncpa %s10, 0
    loop: start=0, step=1, limit=4
    $region2: #{attention_combinator_apply.1} parent=1 // loop_pre_header
      _
    $region3: #{attention_combinator_apply.1} parent=1 // loop_header
      %s13 = sphi 0, %s17
      %p14 = scmp.ge.s32.totalorder %s13, 4
      %s23 = sphi 0, %s25
      %s26 = sphi 0, %s23
      %s27 = sphi 0, %s26
      %s43 = sphi 0, %s27
      %s47 = sphi 0, %s47
      %s49 = sphi 0, %s47
      %s50 = sphi 0, %s49
      %s64 = sphi 0, %s50
      %s68 = sphi 0, %s68
      %s70 = sphi 0, %s68
      %s71 = sphi 0, %s70
      %s85 = sphi 0, %s71
      %s89 = sphi 0, %s89
      %s91 = sphi 0, %s89
      %s92 = sphi 0, %s91
      %s106 = sphi 0, %s92
      %s112 = sphi 0, %s114
      %s115 = sphi 0, %s112
      %s116 = sphi 0, %s115
      %s132 = sphi 0, %s116
    $region4: #{attention_combinator_apply.1} parent=1 // loop_header_branch
      %16 = sbr.rel (%p14) target = $region8
    $region5: #{attention_combinator_apply.1} parent=1 // loop_body
      %s18 = ssub.s32 %s13, 1
      %s19 = ssub.s32 %s13, 2
      %s20 = sadd.s32 %s13, 1
      %s21 = ssub.s32 %s13, %s20
      %p22 = scmp.eq.s32.totalorder %s21, 0
      %s24 = sadd.s32 %s23, 1
      %s25 = scalar_select %p22, %s23, %s24
      %p28 = pneg %p22
      %p29 = scmp.eq.s32.totalorder %s13, 1
      %p30 = por %p28, %p29
      %p31 = scmp.ne.s32.totalorder %s23, %s26
      %p32 = scmp.eq.s32.totalorder %s13, 0
      %p33 = por %p31, %p32
      %p34 = scmp.ne.s32.totalorder %s23, %s26
      %p35 = scmp.eq.s32.totalorder %s18, 1
      %p36 = por %p34, %p35
      %p37 = scmp.ne.s32.totalorder %s26, %s27
      %p38 = scmp.eq.s32.totalorder %s18, 0
      %p39 = por %p37, %p38
      %p40 = scmp.ne.s32.totalorder %s26, %s27
      %p41 = scmp.eq.s32.totalorder %s19, 1
      %p42 = por %p40, %p41
      %p44 = scmp.ne.s32.totalorder %s27, %s43
      %p45 = scmp.eq.s32.totalorder %s19, 0
      %p46 = por %p44, %p45
      %s48 = sadd.s32 %s47, 1
      %p51 = scmp.eq.s32.totalorder %s13, 1
      %p52 = scmp.ne.s32.totalorder %s47, %s49
      %p53 = scmp.eq.s32.totalorder %s13, 0
      %p54 = por %p52, %p53
      %p55 = scmp.ne.s32.totalorder %s47, %s49
      %p56 = scmp.eq.s32.totalorder %s18, 1
      %p57 = por %p55, %p56
      %p58 = scmp.ne.s32.totalorder %s49, %s50
      %p59 = scmp.eq.s32.totalorder %s18, 0
      %p60 = por %p58, %p59
      %p61 = scmp.ne.s32.totalorder %s49, %s50
      %p62 = scmp.eq.s32.totalorder %s19, 1
      %p63 = por %p61, %p62
      %p65 = scmp.ne.s32.totalorder %s50, %s64
      %p66 = scmp.eq.s32.totalorder %s19, 0
      %p67 = por %p65, %p66
      %s69 = sadd.s32 %s68, 1
      %p72 = scmp.eq.s32.totalorder %s13, 1
      %p73 = scmp.ne.s32.totalorder %s68, %s70
      %p74 = scmp.eq.s32.totalorder %s13, 0
      %p75 = por %p73, %p74
      %p76 = scmp.ne.s32.totalorder %s68, %s70
      %p77 = scmp.eq.s32.totalorder %s18, 1
      %p78 = por %p76, %p77
      %p79 = scmp.ne.s32.totalorder %s70, %s71
      %p80 = scmp.eq.s32.totalorder %s18, 0
      %p81 = por %p79, %p80
      %p82 = scmp.ne.s32.totalorder %s70, %s71
      %p83 = scmp.eq.s32.totalorder %s19, 1
      %p84 = por %p82, %p83
      %p86 = scmp.ne.s32.totalorder %s71, %s85
      %p87 = scmp.eq.s32.totalorder %s19, 0
      %p88 = por %p86, %p87
      %s90 = sadd.s32 %s89, 1
      %p93 = scmp.eq.s32.totalorder %s13, 1
      %p94 = scmp.ne.s32.totalorder %s89, %s91
      %p95 = scmp.eq.s32.totalorder %s13, 0
      %p96 = por %p94, %p95
      %p97 = scmp.ne.s32.totalorder %s89, %s91
      %p98 = scmp.eq.s32.totalorder %s18, 1
      %p99 = por %p97, %p98
      %p100 = scmp.ne.s32.totalorder %s91, %s92
      %p101 = scmp.eq.s32.totalorder %s18, 0
      %p102 = por %p100, %p101
      %p103 = scmp.ne.s32.totalorder %s91, %s92
      %p104 = scmp.eq.s32.totalorder %s19, 1
      %p105 = por %p103, %p104
      %p107 = scmp.ne.s32.totalorder %s92, %s106
      %p108 = scmp.eq.s32.totalorder %s19, 0
      %p109 = por %p107, %p108
      %s110 = ssub.s32 %s13, %s20
      %p111 = scmp.eq.s32.totalorder %s110, 0
      %s113 = sadd.s32 %s112, 1
      %s114 = scalar_select %p111, %s112, %s113
      %p117 = pneg %p111
      %p118 = scmp.eq.s32.totalorder %s13, 1
      %p119 = por %p117, %p118
      %p120 = scmp.ne.s32.totalorder %s112, %s115
      %p121 = scmp.eq.s32.totalorder %s13, 0
      %p122 = por %p120, %p121
      %p123 = scmp.ne.s32.totalorder %s112, %s115
      %p124 = scmp.eq.s32.totalorder %s18, 1
      %p125 = por %p123, %p124
      %p126 = scmp.ne.s32.totalorder %s115, %s116
      %p127 = scmp.eq.s32.totalorder %s18, 0
      %p128 = por %p126, %p127
      %p129 = scmp.ne.s32.totalorder %s115, %s116
      %p130 = scmp.eq.s32.totalorder %s19, 1
      %p131 = por %p129, %p130
      %p133 = scmp.ne.s32.totalorder %s116, %s132
      %p134 = scmp.eq.s32.totalorder %s19, 0
      %p135 = por %p133, %p134
      %p136 = scmp.le.s32.totalorder 1, %s13
      %p137 = scmp.lt.s32.totalorder %s13, 3
      %p138 = pnand %p136, %p137
      %p139 = pneg %p138
      // Predicated region
      $region9: #{attention_combinator_apply.1} parent=5 // pred_check
        _
      $region10: #{attention_combinator_apply.1} parent=5 // pred_check_branch
        %141 = sbr.rel (%p138) target = $region12
      $region11: #{attention_combinator_apply.1} parent=5 // pred_region
        %s142 = ssub.s32 %s13, 1
        // Predicated region
        $region13: #{attention_combinator_apply.1} parent=11 // pred_check
          %p143 = pneg %p60
        $region14: #{attention_combinator_apply.1} parent=11 // pred_check_branch
          %145 = sbr.rel (%p143) target = $region16
        $region15: #{attention_combinator_apply.1} parent=11 // pred_region
          _
        $region16: #{attention_combinator_apply.1} parent=11 // pred_fallthru
          _
        // Predicated region
        $region17: #{attention_combinator_apply.1} parent=11 // pred_check
          %p146 = pneg %p81
        $region18: #{attention_combinator_apply.1} parent=11 // pred_check_branch
          %148 = sbr.rel (%p146) target = $region20
        $region19: #{attention_combinator_apply.1} parent=11 // pred_region
          _
        $region20: #{attention_combinator_apply.1} parent=11 // pred_fallthru
          _
        // Predicated region
        $region21: #{attention_combinator_apply.1} parent=11 // pred_check
          %p149 = pneg %p102
        $region22: #{attention_combinator_apply.1} parent=11 // pred_check_branch
          %151 = sbr.rel (%p149) target = $region24
        $region23: #{attention_combinator_apply.1} parent=11 // pred_region
          _
        $region24: #{attention_combinator_apply.1} parent=11 // pred_fallthru
          _
      $region12: #{attention_combinator_apply.1} parent=5 // pred_fallthru
        _
      %p152 = scmp.lt.s32.totalorder %s13, 2
      // Predicated region
      $region25: #{attention_combinator_apply.1} parent=5 // pred_check
        %p153 = pneg %p152
      $region26: #{attention_combinator_apply.1} parent=5 // pred_check_branch
        %155 = sbr.rel (%p153) target = $region28
      $region27: #{attention_combinator_apply.1} parent=5 // pred_region
        // Predicated region
        $region29: #{attention_combinator_apply.1} parent=27 // pred_check
          %p156 = pneg %p33
        $region30: #{attention_combinator_apply.1} parent=27 // pred_check_branch
          %158 = sbr.rel (%p156) target = $region32
        $region31: #{attention_combinator_apply.1} parent=27 // pred_region
          %s159 = smul.u32 2, %s13
          %s160 = ssub.s32 3, %s159
          %p161 = scmp.lt.s32.totalorder %s160, 2
          %s162 = scalar_select %p161, %s160, 2
          %s163 = smul.u32 64, %s162
          %p164 = scmp.lt.s32.totalorder %s159, 2
          %s165 = scalar_select %p164, %s159, 2
          %s166 = smul.addr %s165, 4
          %s167 = scalar_lea.vmem %s0, %s166
          %s168 = smul.u32 2, %s13
          %s169 = ssub.s32 3, %s168
          %p170 = scmp.lt.s32.totalorder %s169, 2
          %s171 = scalar_select %p170, %s169, 2
          %s172 = smul.u32 64, %s171
        $region32: #{attention_combinator_apply.1} parent=27 // pred_fallthru
          _
      $region28: #{attention_combinator_apply.1} parent=5 // pred_fallthru
        _
      %p173 = scmp.le.s32.totalorder 1, %s13
      %p174 = scmp.lt.s32.totalorder %s13, 3
      %p175 = pnand %p173, %p174
      %p176 = pneg %p175
      // Predicated region
      $region33: #{attention_combinator_apply.1} parent=5 // pred_check
        _
      $region34: #{attention_combinator_apply.1} parent=5 // pred_check_branch
        %178 = sbr.rel (%p175) target = $region36
      $region35: #{attention_combinator_apply.1} parent=5 // pred_region
        %s179 = ssub.s32 %s13, 1
        %s180 = smul.u32 2, %s18
        %s181 = ssub.s32 3, %s180
        %p182 = scmp.lt.s32.totalorder %s181, 2
        %s183 = scalar_select %p182, %s181, 2
        %s184 = smul.u32 64, %s183
        %p185 = scmp.lt.s32.totalorder %s180, 2
        %s186 = scalar_select %p185, %s180, 2
        %s187 = smul.addr %s186, 4
        %s188 = scalar_lea.vmem %s0, %s187
        %p189 = pneg %p39
        %p190 = pneg %p36
        %p191 = pneg %p60
        %p192 = pneg %p57
        %p193 = pneg %p81
        %p194 = pneg %p78
        %p195 = pneg %p102
        %p196 = pneg %p99
        %p197 = pneg %p128
        %p198 = pneg %p125
        %s199 = sand.u32 %s115, 1
        %s200 = scalar_lea.sflag [#allocation3], %s199
        %s201 = sand.u32 %s115, 1
        %s202 = smul.addr %s201, 16
        %s203 = scalar_lea.vmem [#allocation2], %s202
        %s204 = smul.u32 2, %s18
        %s205 = ssub.s32 3, %s204
        %p206 = scmp.lt.s32.totalorder %s205, 2
        %s207 = scalar_select %p206, %s205, 2
        %s208 = smul.u32 64, %s207
        %p209 = scmp.lt.s32.totalorder %s204, 2
        %s210 = scalar_select %p209, %s204, 2
        %s211 = smul.addr %s210, 4
        %s212 = scalar_lea.vmem %s0, %s211
        %s213 = smul.u32 2, %s18
        %s214 = ssub.s32 3, %s213
        %p215 = scmp.lt.s32.totalorder %s214, 2
        %s216 = scalar_select %p215, %s214, 2
        %s217 = smul.u32 64, %s216
        %s218 = smul.u32 2, %s18
        %s219 = ssub.s32 3, %s218
        %p220 = scmp.lt.s32.totalorder %s219, 2
        %s221 = scalar_select %p220, %s219, 2
        %s222 = smul.u32 128, %s221
        %v224 = vld [vmem:[%s212] sm:$0xf]
        %v225 = vld [vmem:[%s212 + $0x4] sm:$0xf]
        %v226 = vunpack.c.l.bf16 %v224
        %v227 = vunpack.c.l.bf16 %v225
        %v228 = vld [vmem:[%s1] sm:$0xff]
        %v229 = vld [vmem:[%s1 + $0x8] sm:$0xff]
        %v230 = vld [vmem:[%s1 + $0x10] sm:$0xff]
        %v231 = vld [vmem:[%s1 + $0x18] sm:$0xff]
        %v232 = vld [vmem:[%s1 + $0x20] sm:$0xff]
        %v233 = vld [vmem:[%s1 + $0x28] sm:$0xff]
        %v234 = vld [vmem:[%s1 + $0x30] sm:$0xff]
        %v235 = vld [vmem:[%s1 + $0x38] sm:$0xff]
        %v236 = vld [vmem:[%s1 + $0x40] sm:$0xff]
        %v237 = vld [vmem:[%s1 + $0x48] sm:$0xff]
        %v238 = vld [vmem:[%s1 + $0x50] sm:$0xff]
        %v239 = vld [vmem:[%s1 + $0x58] sm:$0xff]
        %v240 = vld [vmem:[%s1 + $0x60] sm:$0xff]
        %v241 = vld [vmem:[%s1 + $0x68] sm:$0xff]
        %v242 = vld [vmem:[%s1 + $0x70] sm:$0xff]
        %v243 = vld [vmem:[%s1 + $0x78] sm:$0xff]
        %244 = vmatprep.subr.mxu0 0.0
        %245 = vmatpush1.msra.mxu0 %v228
        %246 = vmatprep.subr.mxu0 0.0
        %247 = vmatpush1.msra.mxu0 %v229
        %248 = vmatprep.subr.mxu0 0.0
        %249 = vmatpush1.msra.mxu0 %v230
        %250 = vmatprep.subr.mxu0 0.0
        %251 = vmatpush1.msra.mxu0 %v231
        %252 = vmatprep.subr.mxu0 0.0
        %253 = vmatpush1.msra.mxu0 %v232
        %254 = vmatprep.subr.mxu0 0.0
        %255 = vmatpush1.msra.mxu0 %v233
        %256 = vmatprep.subr.mxu0 0.0
        %257 = vmatpush1.msra.mxu0 %v234
        %258 = vmatprep.subr.mxu0 0.0
        %259 = vmatpush1.msra.mxu0 %v235
        %260 = vmatprep.subr.mxu0 0.0
        %261 = vmatpush1.msra.mxu0 %v236
        %262 = vmatprep.subr.mxu0 0.0
        %263 = vmatpush1.msra.mxu0 %v237
        %264 = vmatprep.subr.mxu0 0.0
        %265 = vmatpush1.msra.mxu0 %v238
        %266 = vmatprep.subr.mxu0 0.0
        %267 = vmatpush1.msra.mxu0 %v239
        %268 = vmatprep.subr.mxu0 0.0
        %269 = vmatpush1.msra.mxu0 %v240
        %270 = vmatprep.subr.mxu0 0.0
        %271 = vmatpush1.msra.mxu0 %v241
        %272 = vmatprep.subr.mxu0 0.0
        %273 = vmatpush1.msra.mxu0 %v242
        %274 = vmatprep.subr.mxu0 0.0
        %275 = vmatpush1.msra.mxu0 %v243
        %276 = vmatprep.subr.mxu0 0.0
        %277 = vmatpush1.msra.mxu0 0.0
        %278 = vmatprep.subr.mxu0 0.0
        %279 = vmatpush1.msra.mxu0 0.0
        %280 = vmatprep.subr.mxu0 0.0
        %281 = vmatpush1.msra.mxu0 0.0
        %282 = vmatprep.subr.mxu0 0.0
        %283 = vmatpush1.msra.mxu0 0.0
        %284 = vmatprep.subr.mxu0 0.0
        %285 = vmatpush1.msra.mxu0 0.0
        %286 = vmatprep.subr.mxu0 0.0
        %287 = vmatpush1.msra.mxu0 0.0
        %288 = vmatprep.subr.mxu0 0.0
        %289 = vmatpush1.msra.mxu0 0.0
        %290 = vmatprep.subr.mxu0 0.0
        %291 = vmatpush1.msra.mxu0 0.0
        %292 = vmatprep.subr.mxu0 0.0
        %293 = vmatpush1.msra.mxu0 0.0
        %294 = vmatprep.subr.mxu0 0.0
        %295 = vmatpush1.msra.mxu0 0.0
        %296 = vmatprep.subr.mxu0 0.0
        %297 = vmatpush1.msra.mxu0 0.0
        %298 = vmatprep.subr.mxu0 0.0
        %299 = vmatpush1.msra.mxu0 0.0
        %300 = vmatprep.subr.mxu0 0.0
        %301 = vmatpush1.msra.mxu0 0.0
        %302 = vmatprep.subr.mxu0 0.0
        %303 = vmatpush1.msra.mxu0 0.0
        %304 = vmatprep.subr.mxu0 0.0
        %305 = vmatpush1.msra.mxu0 0.0
        %306 = vmatprep.subr.mxu0 0.0
        %307 = vmatpush1.msra.mxu0 0.0
        %308 = vmatprep.mubr.f32.mxu0 0.0
        %309 = vmatmul.mubr.f32.gmra.mrb[0].mxu0 %v226
        %v310 = vpop.f32.mrb[0].mxu0
        %v311 = vadd.f32 0.0, %v310
        %v312 = vpop.f32.mrb[0].mxu0
        %313 = vmatprep.mubr.f32.mxu0 0.0
        %314 = vmatmul.mubr.f32.gmra.mrb[0].mxu0 %v227
        %v315 = vpop.f32.mrb[0].mxu0
        %v316 = vadd.f32 0.0, %v315
        %v317 = vpop.f32.mrb[0].mxu0
        %318 = vdwg.mxu0
        %v319 = vmax.f32 %v311, 0.0
        %v320 = vmax.f32 %v316, 0.0
        %v321 = vmul.f32 %v319, 1.442695
        %v322 = vpow.pop %v321
        %v323 = vmul.f32 %v320, 1.442695
        %v324 = vpow.pop %v323
        %v325 = vld [vmem:[%s2] sm:$0xf]
        %vm326 = vcmask 31744
        %v328 = vsel %vm326, %v322, 0
        %v331 = vsel %vm326, %v324, 0
        %vm333 = vcmask 1043456
        %v335 = vsel %vm333, %v325, 0
        %337 = vmatprep.subr.mxu0 0.0
        %338 = vmatpush1.msra.mxu0 %v335
        %339 = vmatprep.subr.mxu0 0.0
        %340 = vmatpush1.msra.mxu0 0.0
        %341 = vmatprep.subr.mxu0 0.0
        %342 = vmatpush1.msra.mxu0 0.0
        %343 = vmatprep.subr.mxu0 0.0
        %344 = vmatpush1.msra.mxu0 0.0
        %345 = vmatprep.subr.mxu0 0.0
        %346 = vmatpush1.msra.mxu0 0.0
        %347 = vmatprep.subr.mxu0 0.0
        %348 = vmatpush1.msra.mxu0 0.0
        %349 = vmatprep.subr.mxu0 0.0
        %350 = vmatpush1.msra.mxu0 0.0
        %351 = vmatprep.subr.mxu0 0.0
        %352 = vmatpush1.msra.mxu0 0.0
        %353 = vmatprep.subr.mxu0 0.0
        %354 = vmatpush1.msra.mxu0 0.0
        %355 = vmatprep.subr.mxu0 0.0
        %356 = vmatpush1.msra.mxu0 0.0
        %357 = vmatprep.subr.mxu0 0.0
        %358 = vmatpush1.msra.mxu0 0.0
        %359 = vmatprep.subr.mxu0 0.0
        %360 = vmatpush1.msra.mxu0 0.0
        %361 = vmatprep.subr.mxu0 0.0
        %362 = vmatpush1.msra.mxu0 0.0
        %363 = vmatprep.subr.mxu0 0.0
        %364 = vmatpush1.msra.mxu0 0.0
        %365 = vmatprep.subr.mxu0 0.0
        %366 = vmatpush1.msra.mxu0 0.0
        %367 = vmatprep.subr.mxu0 0.0
        %368 = vmatpush1.msra.mxu0 0.0
        %369 = vmatprep.subr.mxu0 0.0
        %370 = vmatpush1.msra.mxu0 0.0
        %371 = vmatprep.subr.mxu0 0.0
        %372 = vmatpush1.msra.mxu0 0.0
        %373 = vmatprep.subr.mxu0 0.0
        %374 = vmatpush1.msra.mxu0 0.0
        %375 = vmatprep.subr.mxu0 0.0
        %376 = vmatpush1.msra.mxu0 0.0
        %377 = vmatprep.subr.mxu0 0.0
        %378 = vmatpush1.msra.mxu0 0.0
        %379 = vmatprep.subr.mxu0 0.0
        %380 = vmatpush1.msra.mxu0 0.0
        %381 = vmatprep.subr.mxu0 0.0
        %382 = vmatpush1.msra.mxu0 0.0
        %383 = vmatprep.subr.mxu0 0.0
        %384 = vmatpush1.msra.mxu0 0.0
        %385 = vmatprep.subr.mxu0 0.0
        %386 = vmatpush1.msra.mxu0 0.0
        %387 = vmatprep.subr.mxu0 0.0
        %388 = vmatpush1.msra.mxu0 0.0
        %389 = vmatprep.subr.mxu0 0.0
        %390 = vmatpush1.msra.mxu0 0.0
        %391 = vmatprep.subr.mxu0 0.0
        %392 = vmatpush1.msra.mxu0 0.0
        %393 = vmatprep.subr.mxu0 0.0
        %394 = vmatpush1.msra.mxu0 0.0
        %395 = vmatprep.subr.mxu0 0.0
        %396 = vmatpush1.msra.mxu0 0.0
        %397 = vmatprep.subr.mxu0 0.0
        %398 = vmatpush1.msra.mxu0 0.0
        %399 = vmatprep.subr.mxu0 0.0
        %400 = vmatpush1.msra.mxu0 0.0
        %401 = vmatprep.mubr.f32.mxu0 0.0
        %402 = vmatmul.mubr.f32.gmra.mrb[0].mxu0 %v328
        %v403 = vpop.f32.mrb[0].mxu0
        %v404 = vadd.f32 0.0, %v403
        %v405 = vpop.f32.mrb[0].mxu0
        %406 = vmatprep.mubr.f32.mxu0 0.0
        %407 = vmatmul.mubr.f32.gmra.mrb[0].mxu0 %v331
        %v408 = vpop.f32.mrb[0].mxu0
        %v409 = vadd.f32 0.0, %v408
        %v410 = vpop.f32.mrb[0].mxu0
        %411 = vdwg.mxu0
        %v412 = vmul.f32 %v226, %v404
        %v413 = vmul.f32 %v227, %v409
        %v414 = vpack.c.bf16 %v413, %v412
        %v415 = vld [vmem:[%s3] sm:$0xf]
        %v416 = vld [vmem:[%s3 + $0x4] sm:$0xf]
        %v417 = vld [vmem:[%s3 + $0x8] sm:$0xf]
        %v418 = vld [vmem:[%s3 + $0xc] sm:$0xf]
        %v419 = vld [vmem:[%s3 + $0x10] sm:$0xf]
        %v420 = vld [vmem:[%s3 + $0x14] sm:$0xf]
        %v421 = vld [vmem:[%s3 + $0x18] sm:$0xf]
        %v422 = vld [vmem:[%s3 + $0x1c] sm:$0xf]
        %v423 = vld [vmem:[%s3 + $0x20] sm:$0xf]
        %v424 = vld [vmem:[%s3 + $0x24] sm:$0xf]
        %v425 = vld [vmem:[%s3 + $0x28] sm:$0xf]
        %v426 = vld [vmem:[%s3 + $0x2c] sm:$0xf]
        %v427 = vld [vmem:[%s3 + $0x30] sm:$0xf]
        %v428 = vld [vmem:[%s3 + $0x34] sm:$0xf]
        %v429 = vld [vmem:[%s3 + $0x38] sm:$0xf]
        %v430 = vld [vmem:[%s3 + $0x3c] sm:$0xf]
        %v447 = vunpack.c.l.b16 %v415
        %v448 = vunpack.c.l.b16 %v416
        %v449 = vunpack.c.l.b16 %v417
        %v450 = vunpack.c.l.b16 %v418
        %v451 = vunpack.c.l.b16 %v419
        %v452 = vunpack.c.l.b16 %v420
        %v453 = vunpack.c.l.b16 %v421
        %v454 = vunpack.c.l.b16 %v422
        %v455 = vunpack.c.l.b16 %v423
        %v456 = vunpack.c.l.b16 %v424
        %v457 = vunpack.c.l.b16 %v425
        %v458 = vunpack.c.l.b16 %v426
        %v459 = vunpack.c.l.b16 %v427
        %v460 = vunpack.c.l.b16 %v428
        %v461 = vunpack.c.l.b16 %v429
        %v462 = vunpack.c.l.b16 %v430
        %v463 = vpack.c.b16 %v448, %v447
        %v464 = vpack.c.b16 %v450, %v449
        %v465 = vpack.c.b16 %v452, %v451
        %v466 = vpack.c.b16 %v454, %v453
        %v467 = vpack.c.b16 %v456, %v455
        %v468 = vpack.c.b16 %v458, %v457
        %v469 = vpack.c.b16 %v460, %v459
        %v470 = vpack.c.b16 %v462, %v461
        %479 = vmatprep.subr.bf16.mxu0 0
        %480 = vmatpush1.bf16.msra.mxu0 %v463
        %481 = vmatprep.subr.bf16.mxu0 0
        %482 = vmatpush1.bf16.msra.mxu0 %v464
        %483 = vmatprep.subr.bf16.mxu0 0
        %484 = vmatpush1.bf16.msra.mxu0 %v465
        %485 = vmatprep.subr.bf16.mxu0 0
        %486 = vmatpush1.bf16.msra.mxu0 %v466
        %487 = vmatprep.subr.bf16.mxu0 0
        %488 = vmatpush1.bf16.msra.mxu0 %v467
        %489 = vmatprep.subr.bf16.mxu0 0
        %490 = vmatpush1.bf16.msra.mxu0 %v468
        %491 = vmatprep.subr.bf16.mxu0 0
        %492 = vmatpush1.bf16.msra.mxu0 %v469
        %493 = vmatprep.subr.bf16.mxu0 0
        %494 = vmatpush1.bf16.msra.mxu0 %v470
        %495 = vmatprep.subr.bf16.mxu0 0
        %496 = vmatpush1.bf16.msra.mxu0 0
        %497 = vmatprep.subr.bf16.mxu0 0
        %498 = vmatpush1.bf16.msra.mxu0 0
        %499 = vmatprep.subr.bf16.mxu0 0
        %500 = vmatpush1.bf16.msra.mxu0 0
        %501 = vmatprep.subr.bf16.mxu0 0
        %502 = vmatpush1.bf16.msra.mxu0 0
        %503 = vmatprep.subr.bf16.mxu0 0
        %504 = vmatpush1.bf16.msra.mxu0 0
        %505 = vmatprep.subr.bf16.mxu0 0
        %506 = vmatpush1.bf16.msra.mxu0 0
        %507 = vmatprep.subr.bf16.mxu0 0
        %508 = vmatpush1.bf16.msra.mxu0 0
        %509 = vmatprep.subr.bf16.mxu0 0
        %510 = vmatpush1.bf16.msra.mxu0 0
        %511 = vmatprep.mubr.bf16.mxu0 0
        %512 = vmatmul.mubr.bf16.gmra.mrb[0].mxu0 %v414
        %v513 = vpop.f32.mrb[0].mxu0
        %v514 = vadd.f32 0.0, %v513
        %v515 = vpop.f32.mrb[0].mxu0
        %v516 = vpop.f32.mrb[0].mxu0
        %v517 = vadd.f32 0.0, %v516
        %v518 = vpop.f32.mrb[0].mxu0
        %519 = vdwg.mxu0
        %v520 = vmax.f32 %v514, 0.0
        %v521 = vmax.f32 %v517, 0.0
        %vm522 = vcmask 261120
        %523 = vst.msk [vmem:[%s203] sm:$0xff] %vm522, %v520
        %524 = vst.msk [vmem:[%s203 + $0x8] sm:$0xff] %vm522, %v521
        %s525 = sand.u32 %s115, 1
        %s526 = scalar_lea.sflag [#allocation3], %s525
        %s527 = sand.u32 %s115, 1
        %s528 = smul.addr %s527, 16
        %s529 = scalar_lea.vmem [#allocation2], %s528
        // Predicated region
        $region37: #{attention_combinator_apply.1} parent=35 // pred_check
          %p530 = pneg %p125
        $region38: #{attention_combinator_apply.1} parent=35 // pred_check_branch
          %532 = sbr.rel (%p530) target = $region40
        $region39: #{attention_combinator_apply.1} parent=35 // pred_region
          %s533 = smul.u32 2, %s18
          %s534 = ssub.s32 3, %s533
          %p535 = scmp.lt.s32.totalorder %s534, 2
          %s536 = scalar_select %p535, %s534, 2
          %s537 = smul.u32 128, %s536
          %s539 = ssub.s32 256, %s537
          %540 = vsyncadd %s526, %s539
          %p541 = scmp.ne.s32.totalorder 0, %s537
          %s542 = smul.addr %s533, 128
          %s543 = scalar_lea.hbm %s4, %s542
          %s544 = smul.u32 8, %s536
          %s545 = sshll.u32 %s529, 4
          %s546 = int_to_ptr.vmem [resolvable:$true] %s545
          %s547 = sshll.u32 %s544, 4
          %551 = dma.vmem_to_hbm [thread:$0]  (%p541), %s546, %s547, %s543, %s526, 128, 128, 8
        $region40: #{attention_combinator_apply.1} parent=35 // pred_fallthru
          _
      $region36: #{attention_combinator_apply.1} parent=5 // pred_fallthru
        _
      %p552 = scmp.le.s32.totalorder 2, %s13
      // Predicated region
      $region41: #{attention_combinator_apply.1} parent=5 // pred_check
        %p553 = pneg %p552
      $region42: #{attention_combinator_apply.1} parent=5 // pred_check_branch
        %555 = sbr.rel (%p553) target = $region44
      $region43: #{attention_combinator_apply.1} parent=5 // pred_region
        %s556 = ssub.s32 %s13, 2
        // Predicated region
        $region45: #{attention_combinator_apply.1} parent=43 // pred_check
          %p557 = pneg %p131
        $region46: #{attention_combinator_apply.1} parent=43 // pred_check_branch
          %559 = sbr.rel (%p557) target = $region48
        $region47: #{attention_combinator_apply.1} parent=43 // pred_region
          %s560 = sand.u32 %s116, 1
          %s561 = scalar_lea.sflag [#allocation3], %s560
          %s562 = sand.u32 %s116, 1
          %s563 = smul.addr %s562, 16
          %s564 = scalar_lea.vmem [#allocation2], %s563
          %565 = dma.done %s561, 256
        $region48: #{attention_combinator_apply.1} parent=43 // pred_fallthru
          _
      $region44: #{attention_combinator_apply.1} parent=5 // pred_fallthru
        _
    $region6: #{attention_combinator_apply.1} parent=1 // loop_footer
      %s17 = sadd.s32 1, %s13
    $region7: #{attention_combinator_apply.1} parent=1 // loop_footer_branch
      %12 = sbr.rel target = $region3
    $region8: #{attention_combinator_apply.1} parent=1 // loop_exit
      _
    %566 = vsyncpa [#allocation3], 1
    %s567 = scalar_lea.sflag [#allocation3], 1
    %568 = vsyncpa %s567, 1

</llo_original>
